<compile_context>
chip_gen: v7x
topology: tpu7x:2x2x1
jax: 0.10.0
libtpu: 0.0.40
codegen_flags: <defaults>
</compile_context>

<pallas_src>
import functools
import math

import jax
import jax.numpy as jnp
from jax.experimental import pallas as pl
from jax.experimental.pallas import tpu as pltpu


# ---------------------------------------------------------------------------
# Kernel: one row-tiled GEMM.  x block (TILE, K_tot) @ resident packed weight
# (K_tot, N_tot) -> out block (TILE, N_tot).  K_tot is small enough that the
# weight stays resident, so there is no K-loop / accumulator.
# ---------------------------------------------------------------------------
def _make_g1x1_kernel(precision):
    def kernel(x_ref, w_ref, o_ref):
        o_ref[...] = jnp.dot(
            x_ref[...],
            w_ref[...],
            preferred_element_type=jnp.float32,
            precision=precision,
        ).astype(o_ref.dtype)

    return kernel


def _pad_to_lanes(n):
    return ((n + 127) // 128) * 128


def _choose_tile_rows(rows, bytes_per_row, sublane, *, block_budget_bytes,
                      min_grid_steps):
    """Largest row tile whose double-buffered in+out blocks fit the budget,
    but small enough that the grid has >= min_grid_steps steps (pipeline depth
    + megacore sharding on v7x)."""
    max_by_vmem = max(sublane, block_budget_bytes // max(1, 2 * bytes_per_row))
    target = pl.cdiv(rows, min_grid_steps)
    tile = min(max_by_vmem, max(target, sublane))
    tile = max(sublane, (tile // sublane) * sublane)  # sublane-aligned
    return rows if tile >= rows else tile


# ---------------------------------------------------------------------------
# Parameter-setup-time weight packing (hoisted out of the forward path).
# ---------------------------------------------------------------------------
def prepare_g1x1_weights(weights, f_in, compute_dtype=jnp.bfloat16):
    """Build the packed block-diagonal weight once.

    weights: {str(degree): (m_out, m_in)} self-interaction matrices (f_out).
    f_in:    {degree: m_in} input fiber multiplicities.

    Per degree the (m_out, m_in) weight is lifted to kron(W.T, I_{2d+1}) so the
    flattened (m_in*(2d+1)) feature columns map to the flattened (m_out*(2d+1))
    output columns; all degrees then go on the diagonal of one (K_tot, N_tot)
    matrix so the whole layer is a single lane-dense GEMM.
    """
    degrees = tuple(sorted(d for d in f_in if str(d) in weights))
    meta = []
    blocks = []
    for d in degrees:
        rep = 2 * d + 1
        w = jnp.asarray(weights[str(d)], dtype=jnp.float32)
        m_out, m_in = w.shape
        assert m_in == int(f_in[d]), (d, m_in, f_in[d])
        eye = jnp.eye(rep, dtype=jnp.float32)
        # kron(W.T, I_rep): (m_in*rep, m_out*rep)
        w_eff = (w.T[:, None, :, None] * eye[None, :, None, :]).reshape(
            m_in * rep, m_out * rep)
        blocks.append(w_eff)
        meta.append((int(d), int(m_in), int(m_out)))
    meta = tuple(meta)

    k_tot = sum(m_in * (2 * d + 1) for d, m_in, _ in meta)
    n_tot = sum(m_out * (2 * d + 1) for d, _, m_out in meta)
    w_packed = jnp.zeros((max(k_tot, 1), max(n_tot, 1)), jnp.float32)
    k_off = n_off = 0
    for blk, (d, m_in, m_out) in zip(blocks, meta):
        rep = 2 * d + 1
        w_packed = w_packed.at[k_off:k_off + m_in * rep,
                               n_off:n_off + m_out * rep].set(blk)
        k_off += m_in * rep
        n_off += m_out * rep

    return {"meta": meta, "w_packed": w_packed.astype(compute_dtype)}


# ---------------------------------------------------------------------------
# Fused forward (single pallas_call for all degrees).
# ---------------------------------------------------------------------------
@functools.partial(
    jax.jit,
    static_argnames=("meta", "compute_dtype", "vmem_budget_bytes",
                     "min_grid_steps"),
)
def _g1x1_fused(xs, w_packed, *, meta, compute_dtype, vmem_budget_bytes,
                min_grid_steps):
    lead = xs[0].shape[:-2]
    for x in xs[1:]:
        assert x.shape[:-2] == lead, "all degrees must share leading dims"
    rows = int(math.prod(lead)) if lead else 1

    # Flatten (..., m_in, rep) -> (rows, m_in*rep) (free, row-major) and pack
    # all degrees along the lane axis.  The bf16 cast fuses with the concat
    # into a single XLA pass over the activations.
    x_flat = [
        x.reshape(rows, x.shape[-2] * x.shape[-1]).astype(compute_dtype)
        for x in xs
    ]
    x_cat = x_flat[0] if len(x_flat) == 1 else jnp.concatenate(x_flat, axis=-1)

    w_packed = w_packed.astype(compute_dtype)
    k_tot = x_cat.shape[1]
    n_tot = w_packed.shape[1]

    itemsize = jnp.dtype(compute_dtype).itemsize
    sublane = 8 * (4 // itemsize)          # 8 rows for f32, 16 for bf16
    weight_bytes = w_packed.size * itemsize
    block_budget = max(2 * 1024 * 1024, vmem_budget_bytes - 2 * weight_bytes)
    bytes_per_row = itemsize * (_pad_to_lanes(k_tot) + _pad_to_lanes(n_tot))
    tile = _choose_tile_rows(rows, bytes_per_row, sublane,
                             block_budget_bytes=block_budget,
                             min_grid_steps=min_grid_steps)
    grid = (pl.cdiv(rows, tile),)          # ragged last block handled by Pallas

    # bf16 operands use the MXU natively; for an f32 compute path request
    # full-precision passes explicitly (near-free: the kernel is memory-bound).
    precision = (jax.lax.Precision.HIGHEST
                 if jnp.dtype(compute_dtype) == jnp.float32 else None)

    out2 = pl.pallas_call(
        _make_g1x1_kernel(precision),
        out_shape=jax.ShapeDtypeStruct((rows, n_tot), compute_dtype),
        grid_spec=pl.GridSpec(
            grid=grid,
            in_specs=[
                pl.BlockSpec((tile, k_tot), lambda i: (i, 0)),   # activations
                pl.BlockSpec((k_tot, n_tot), lambda i: (0, 0)),  # resident weight
            ],
            out_specs=pl.BlockSpec((tile, n_tot), lambda i: (i, 0)),
        ),
        compiler_params=pltpu.CompilerParams(
            dimension_semantics=("parallel",),  # shard row tiles across v7x's 2 TCs
            vmem_limit_bytes=32 * 1024 * 1024,  # v5e scoped default is only 16 MiB
        ),
    )(x_cat, w_packed)

    # Unpack the lane-dense output back into the per-degree dict layout.
    outs = []
    n_off = 0
    for (d, _, m_out) in meta:
        rep = 2 * d + 1
        n = m_out * rep
        outs.append(out2[:, n_off:n_off + n].reshape(*lead, m_out, rep))
        n_off += n
    return tuple(outs)


def g1x1_se3_forward(features, prepared, *, compute_dtype=jnp.bfloat16,
                     vmem_budget_bytes=8 * 1024 * 1024, min_grid_steps=8):
    """Pallas forward of G1x1SE3: {d: W_d @ features[d]} for degrees in f_out."""
    meta = prepared["meta"]
    if not meta:
        return {}
    missing = [d for (d, _, _) in meta if d not in features]
    assert not missing, f"features missing degrees {missing} required by weights"
    xs = tuple(features[d] for (d, _, _) in meta)
    outs = _g1x1_fused(xs, prepared["w_packed"], meta=meta,
                       compute_dtype=compute_dtype,
                       vmem_budget_bytes=vmem_budget_bytes,
                       min_grid_steps=min_grid_steps)
    return {d: o for (d, _, _), o in zip(meta, outs)}


def reference_g1x1_se3(features, weights):
    out = {}
    for k, v in features.items():
        kk = str(k)
        if kk in weights:
            out[k] = jnp.einsum("oi,...ic->...oc", weights[kk], v)
    return out


if __name__ == "__main__":
    key = jax.random.PRNGKey(0)

    # Small fibers consistent with the module: f_in = f_out = {0: 32, 1: 32}
    # (hidden=32 channels for degree-0 and degree-1 features), batch=2, points=16.
    batch, points = 2, 16
    nodes = batch * points
    f_in = {0: 32, 1: 32}
    f_out = {0: 32, 1: 32}

    keys = jax.random.split(key, len(f_in) + len(f_out))
    features = {}
    weights = {}
    ki = 0
    for d, m_in in f_in.items():
        rep = 2 * d + 1
        features[d] = jax.random.normal(keys[ki], (nodes, m_in, rep),
                                        dtype=jnp.float32)
        ki += 1
    for d, m_out in f_out.items():
        m_in = f_in[d]
        # matches torch.randn(m_out, m_in) / sqrt(m_in) init (deterministic here)
        weights[str(d)] = jax.random.normal(
            keys[ki], (m_out, m_in), dtype=jnp.float32
        ) / jnp.sqrt(jnp.float32(m_in))
        ki += 1

    # Weight packing happens once, at parameter setup time.
    prepared = prepare_g1x1_weights(weights, f_in, compute_dtype=jnp.bfloat16)

    out = g1x1_se3_forward(features, prepared)
    out = jax.block_until_ready(out)

    ref = reference_g1x1_se3(features, weights)
    for d in f_out:
        assert out[d].shape == (nodes, f_out[d], 2 * d + 1), out[d].shape
        # Deliberate bf16 streaming (activations/weights/output) with f32 MXU
        # accumulation -> ~0.4% quantization error vs. the f32 reference.
        assert jnp.allclose(out[d].astype(jnp.float32), ref[d],
                            atol=3e-2, rtol=3e-2), f"mismatch at degree {d}"

    print("KERNEL_OK")
</pallas_src>

<mosaic_0001>
module attributes {stable_mosaic.version = 11 : i64} {
  func.func @kernel(%arg0: i32, %arg1: memref<16x128xbf16, #tpu.memory_space<vmem>>, %arg2: memref<128x128xbf16, #tpu.memory_space<vmem>>, %arg3: memref<16x128xbf16, #tpu.memory_space<vmem>>) attributes {dimension_semantics = [#tpu.dimension_semantics<parallel>], iteration_bounds = array<i64: 2>, scalar_prefetch = 0 : i64, scratch_operands = 0 : i64, tpu.core_type = #tpu.core_type<tc>, window_params = [{transform_indices = @transform_0, window_bounds = array<i64: 16, 128>}, {pipeline_mode = #tpu.pipeline_mode<synchronous>, transform_indices = @transform_1, window_bounds = array<i64: 128, 128>}, {transform_indices = @transform_2, window_bounds = array<i64: 16, 128>}]} {
    %c0 = arith.constant 0 : index
    %c0_0 = arith.constant 0 : index
    %0 = vector.load %arg1[%c0, %c0_0] : memref<16x128xbf16, #tpu.memory_space<vmem>>, vector<16x128xbf16>
    %c0_1 = arith.constant 0 : index
    %c0_2 = arith.constant 0 : index
    %1 = vector.load %arg2[%c0_1, %c0_2] : memref<128x128xbf16, #tpu.memory_space<vmem>>, vector<128x128xbf16>
    %cst = arith.constant dense<0.000000e+00> : vector<16x128xf32>
    %2 = tpu.matmul %0, %1, %cst {dimension_numbers = #tpu.dot_dimension_numbers<[1], [0], [0], [1], [0, 0, 1, 1], [], []>} : vector<16x128xbf16>, vector<128x128xbf16>, vector<16x128xf32> -> vector<16x128xf32>
    %3 = arith.truncf %2 : vector<16x128xf32> to vector<16x128xbf16>
    %c0_3 = arith.constant 0 : index
    %c0_4 = arith.constant 0 : index
    %4 = vector.load %arg3[%c0_3, %c0_4] : memref<16x128xbf16, #tpu.memory_space<vmem>>, vector<16x128xbf16>
    tpu.vector_store %arg3[%c0_3, %c0_4], %3 {strides = array<i32>} : memref<16x128xbf16, #tpu.memory_space<vmem>>, vector<16x128xbf16>,
    return
  }
  func.func @transform_0(%arg0: i32) -> (i32, i32) {
    %c0_i32 = arith.constant 0 : i32
    %c0_i32_0 = arith.constant 0 : i32
    return %arg0, %c0_i32 : i32, i32
  }
  func.func @transform_1(%arg0: i32) -> (i32, i32) {
    %c0_i32 = arith.constant 0 : i32
    %c0_i32_0 = arith.constant 0 : i32
    %c0_i32_1 = arith.constant 0 : i32
    return %c0_i32, %c0_i32_0 : i32, i32
  }
  func.func @transform_2(%arg0: i32) -> (i32, i32) {
    %c0_i32 = arith.constant 0 : i32
    %c0_i32_0 = arith.constant 0 : i32
    return %arg0, %c0_i32 : i32, i32
  }
}

</mosaic_0001>

<llo_original>
// kernel: _g1x1_fused.1
$region0: #{_g1x1_fused.1}
  #allocation0 [shape = 'u32[]', space=smem, size = 0x4, offset = 0x4, fixed_abs, tag = 'smem constant byte address 0x4 - core index']
  #allocation1 [shape = 'u32[144,128]{1,0:T(1,128)}', space=vmem, size = 0x12000, scoped, tag = 'internal scratch']
  %s0 = inlined_call_operand.vmem [shape: bf16[32,128], index: 0, kind: input, shape index: {}]
  %s1 = inlined_call_operand.vmem [shape: bf16[128,128], index: 1, kind: input, shape index: {}]
  %s2 = inlined_call_operand.vmem [shape: bf16[32,128], index: 2, kind: output, shape index: {}]
  %s3 = sld [smem:[#allocation0]]
  $region41: #{_g1x1_fused.1} parent=0
    _
  %s5 = ssub.s32 1, %s3
  %s6 = scalar_select 0, %s5, %s3
  loop: start=0, step=1, limit=4
  $region2: #{_g1x1_fused.1} parent=0 // loop_pre_header
    _
  $region3: #{_g1x1_fused.1} parent=0 // loop_header
    %s8 = sphi 0, %s12
    %p9 = scmp.ge.s32.totalorder %s8, 4
    %s18 = sphi 0, %s20
    %s21 = sphi 0, %s18
    %s22 = sphi 0, %s21
    %s38 = sphi 0, %s22
    %s42 = sphi 0, %s42
    %s44 = sphi 0, %s42
    %s45 = sphi 0, %s44
    %s59 = sphi 0, %s45
    %s65 = sphi 0, %s67
    %s68 = sphi 0, %s65
    %s69 = sphi 0, %s68
    %s85 = sphi 0, %s69
  $region4: #{_g1x1_fused.1} parent=0 // loop_header_branch
    %11 = sbr.rel (%p9) target = $region8
  $region5: #{_g1x1_fused.1} parent=0 // loop_body
    %s13 = ssub.s32 %s8, 1
    %s14 = ssub.s32 %s8, 2
    %s15 = sadd.s32 %s8, 1
    %s16 = ssub.s32 %s8, %s15
    %p17 = scmp.eq.s32.totalorder %s16, 0
    %s19 = sadd.s32 %s18, 1
    %s20 = scalar_select %p17, %s18, %s19
    %p23 = pneg %p17
    %p24 = scmp.eq.s32.totalorder %s8, 1
    %p25 = por %p23, %p24
    %p26 = scmp.ne.s32.totalorder %s18, %s21
    %p27 = scmp.eq.s32.totalorder %s8, 0
    %p28 = por %p26, %p27
    %p29 = scmp.ne.s32.totalorder %s18, %s21
    %p30 = scmp.eq.s32.totalorder %s13, 1
    %p31 = por %p29, %p30
    %p32 = scmp.ne.s32.totalorder %s21, %s22
    %p33 = scmp.eq.s32.totalorder %s13, 0
    %p34 = por %p32, %p33
    %p35 = scmp.ne.s32.totalorder %s21, %s22
    %p36 = scmp.eq.s32.totalorder %s14, 1
    %p37 = por %p35, %p36
    %p39 = scmp.ne.s32.totalorder %s22, %s38
    %p40 = scmp.eq.s32.totalorder %s14, 0
    %p41 = por %p39, %p40
    %s43 = sadd.s32 %s42, 1
    %p46 = scmp.eq.s32.totalorder %s8, 1
    %p47 = scmp.ne.s32.totalorder %s42, %s44
    %p48 = scmp.eq.s32.totalorder %s8, 0
    %p49 = por %p47, %p48
    %p50 = scmp.ne.s32.totalorder %s42, %s44
    %p51 = scmp.eq.s32.totalorder %s13, 1
    %p52 = por %p50, %p51
    %p53 = scmp.ne.s32.totalorder %s44, %s45
    %p54 = scmp.eq.s32.totalorder %s13, 0
    %p55 = por %p53, %p54
    %p56 = scmp.ne.s32.totalorder %s44, %s45
    %p57 = scmp.eq.s32.totalorder %s14, 1
    %p58 = por %p56, %p57
    %p60 = scmp.ne.s32.totalorder %s45, %s59
    %p61 = scmp.eq.s32.totalorder %s14, 0
    %p62 = por %p60, %p61
    %s63 = ssub.s32 %s8, %s15
    %p64 = scmp.eq.s32.totalorder %s63, 0
    %s66 = sadd.s32 %s65, 1
    %s67 = scalar_select %p64, %s65, %s66
    %p70 = pneg %p64
    %p71 = scmp.eq.s32.totalorder %s8, 1
    %p72 = por %p70, %p71
    %p73 = scmp.ne.s32.totalorder %s65, %s68
    %p74 = scmp.eq.s32.totalorder %s8, 0
    %p75 = por %p73, %p74
    %p76 = scmp.ne.s32.totalorder %s65, %s68
    %p77 = scmp.eq.s32.totalorder %s13, 1
    %p78 = por %p76, %p77
    %p79 = scmp.ne.s32.totalorder %s68, %s69
    %p80 = scmp.eq.s32.totalorder %s13, 0
    %p81 = por %p79, %p80
    %p82 = scmp.ne.s32.totalorder %s68, %s69
    %p83 = scmp.eq.s32.totalorder %s14, 1
    %p84 = por %p82, %p83
    %p86 = scmp.ne.s32.totalorder %s69, %s85
    %p87 = scmp.eq.s32.totalorder %s14, 0
    %p88 = por %p86, %p87
    %p89 = scmp.le.s32.totalorder 1, %s8
    %p90 = scmp.lt.s32.totalorder %s8, 3
    %p91 = pnand %p89, %p90
    %p92 = pneg %p91
    // Predicated region
    $region9: #{_g1x1_fused.1} parent=5 // pred_check
      _
    $region10: #{_g1x1_fused.1} parent=5 // pred_check_branch
      %94 = sbr.rel (%p91) target = $region12
    $region11: #{_g1x1_fused.1} parent=5 // pred_region
      %s95 = ssub.s32 %s8, 1
      // Predicated region
      $region13: #{_g1x1_fused.1} parent=11 // pred_check
        %p96 = pneg %p55
      $region14: #{_g1x1_fused.1} parent=11 // pred_check_branch
        %98 = sbr.rel (%p96) target = $region16
      $region15: #{_g1x1_fused.1} parent=11 // pred_region
        _
      $region16: #{_g1x1_fused.1} parent=11 // pred_fallthru
        _
    $region12: #{_g1x1_fused.1} parent=5 // pred_fallthru
      _
    %p99 = scmp.lt.s32.totalorder %s8, 2
    // Predicated region
    $region17: #{_g1x1_fused.1} parent=5 // pred_check
      %p100 = pneg %p99
    $region18: #{_g1x1_fused.1} parent=5 // pred_check_branch
      %102 = sbr.rel (%p100) target = $region20
    $region19: #{_g1x1_fused.1} parent=5 // pred_region
      // Predicated region
      $region21: #{_g1x1_fused.1} parent=19 // pred_check
        %p103 = pneg %p28
      $region22: #{_g1x1_fused.1} parent=19 // pred_check_branch
        %105 = sbr.rel (%p103) target = $region24
      $region23: #{_g1x1_fused.1} parent=19 // pred_region
        %s106 = smul.u32 2, %s8
        %p107 = scmp.lt.s32.totalorder %s106, 3
        %s108 = scalar_select %p107, %s106, 3
        %s109 = smul.addr %s108, 4
        %s110 = scalar_lea.vmem %s0, %s109
        %s111 = smul.u32 2, %s8
      $region24: #{_g1x1_fused.1} parent=19 // pred_fallthru
        _
    $region20: #{_g1x1_fused.1} parent=5 // pred_fallthru
      _
    %p112 = scmp.le.s32.totalorder 1, %s8
    %p113 = scmp.lt.s32.totalorder %s8, 3
    %p114 = pnand %p112, %p113
    %p115 = pneg %p114
    // Predicated region
    $region25: #{_g1x1_fused.1} parent=5 // pred_check
      _
    $region26: #{_g1x1_fused.1} parent=5 // pred_check_branch
      %117 = sbr.rel (%p114) target = $region28
    $region27: #{_g1x1_fused.1} parent=5 // pred_region
      %s118 = ssub.s32 %s8, 1
      %s119 = smul.u32 2, %s13
      %p120 = scmp.lt.s32.totalorder %s119, 3
      %s121 = scalar_select %p120, %s119, 3
      %s122 = smul.addr %s121, 4
      %s123 = scalar_lea.vmem %s0, %s122
      %p124 = pneg %p34
      %p125 = pneg %p31
      %p126 = pneg %p55
      %p127 = pneg %p52
      %p128 = pneg %p81
      %p129 = pneg %p78
      %s130 = smul.u32 2, %s13
      %p131 = scmp.lt.s32.totalorder %s130, 3
      %s132 = scalar_select %p131, %s130, 3
      %s133 = smul.addr %s132, 4
      %s134 = scalar_lea.vmem %s2, %s133
      %s135 = smul.u32 2, %s13
      %p136 = scmp.lt.s32.totalorder %s135, 3
      %s137 = scalar_select %p136, %s135, 3
      %s138 = smul.addr %s137, 4
      %s139 = scalar_lea.vmem %s0, %s138
      %s140 = smul.u32 2, %s13
      %s141 = smul.u32 2, %s13
      %p142 = scmp.lt.s32.totalorder %s141, 3
      %s143 = scalar_select %p142, %s141, 3
      %s144 = smul.addr %s143, 4
      %s145 = scalar_lea.vmem %s2, %s144
      %s146 = smul.u32 2, %s13
      %v148 = vld [vmem:[%s139] sm:$0xf]
      %v149 = vld [vmem:[%s139 + $0x4] sm:$0xf]
      %v150 = vld [vmem:[%s1] sm:$0xf]
      %v151 = vld [vmem:[%s1 + $0x4] sm:$0xf]
      %v152 = vld [vmem:[%s1 + $0x8] sm:$0xf]
      %v153 = vld [vmem:[%s1 + $0xc] sm:$0xf]
      %v154 = vld [vmem:[%s1 + $0x10] sm:$0xf]
      %v155 = vld [vmem:[%s1 + $0x14] sm:$0xf]
      %v156 = vld [vmem:[%s1 + $0x18] sm:$0xf]
      %v157 = vld [vmem:[%s1 + $0x1c] sm:$0xf]
      %v158 = vld [vmem:[%s1 + $0x20] sm:$0xf]
      %v159 = vld [vmem:[%s1 + $0x24] sm:$0xf]
      %v160 = vld [vmem:[%s1 + $0x28] sm:$0xf]
      %v161 = vld [vmem:[%s1 + $0x2c] sm:$0xf]
      %v162 = vld [vmem:[%s1 + $0x30] sm:$0xf]
      %v163 = vld [vmem:[%s1 + $0x34] sm:$0xf]
      %v164 = vld [vmem:[%s1 + $0x38] sm:$0xf]
      %v165 = vld [vmem:[%s1 + $0x3c] sm:$0xf]
      %v168 = vunpack.c.l.b16 %v148
      %v169 = vunpack.c.l.b16 %v149
      %v170 = vpack.c.b16 %v169, %v168
      %v188 = vunpack.c.l.b16 %v150
      %v189 = vunpack.c.l.b16 %v151
      %v190 = vunpack.c.l.b16 %v152
      %v191 = vunpack.c.l.b16 %v153
      %v192 = vunpack.c.l.b16 %v154
      %v193 = vunpack.c.l.b16 %v155
      %v194 = vunpack.c.l.b16 %v156
      %v195 = vunpack.c.l.b16 %v157
      %v196 = vunpack.c.l.b16 %v158
      %v197 = vunpack.c.l.b16 %v159
      %v198 = vunpack.c.l.b16 %v160
      %v199 = vunpack.c.l.b16 %v161
      %v200 = vunpack.c.l.b16 %v162
      %v201 = vunpack.c.l.b16 %v163
      %v202 = vunpack.c.l.b16 %v164
      %v203 = vunpack.c.l.b16 %v165
      %v204 = vpack.c.b16 %v189, %v188
      %v205 = vpack.c.b16 %v191, %v190
      %v206 = vpack.c.b16 %v193, %v192
      %v207 = vpack.c.b16 %v195, %v194
      %v208 = vpack.c.b16 %v197, %v196
      %v209 = vpack.c.b16 %v199, %v198
      %v210 = vpack.c.b16 %v201, %v200
      %v211 = vpack.c.b16 %v203, %v202
      %220 = vmatprep.subr.bf16.mxu0 0
      %221 = vmatpush1.bf16.msra.mxu0 %v204
      %222 = vmatprep.subr.bf16.mxu0 0
      %223 = vmatpush1.bf16.msra.mxu0 %v205
      %224 = vmatprep.subr.bf16.mxu0 0
      %225 = vmatpush1.bf16.msra.mxu0 %v206
      %226 = vmatprep.subr.bf16.mxu0 0
      %227 = vmatpush1.bf16.msra.mxu0 %v207
      %228 = vmatprep.subr.bf16.mxu0 0
      %229 = vmatpush1.bf16.msra.mxu0 %v208
      %230 = vmatprep.subr.bf16.mxu0 0
      %231 = vmatpush1.bf16.msra.mxu0 %v209
      %232 = vmatprep.subr.bf16.mxu0 0
      %233 = vmatpush1.bf16.msra.mxu0 %v210
      %234 = vmatprep.subr.bf16.mxu0 0
      %235 = vmatpush1.bf16.msra.mxu0 %v211
      %236 = vmatprep.subr.bf16.mxu0 0
      %237 = vmatpush1.bf16.msra.mxu0 0
      %238 = vmatprep.subr.bf16.mxu0 0
      %239 = vmatpush1.bf16.msra.mxu0 0
      %240 = vmatprep.subr.bf16.mxu0 0
      %241 = vmatpush1.bf16.msra.mxu0 0
      %242 = vmatprep.subr.bf16.mxu0 0
      %243 = vmatpush1.bf16.msra.mxu0 0
      %244 = vmatprep.subr.bf16.mxu0 0
      %245 = vmatpush1.bf16.msra.mxu0 0
      %246 = vmatprep.subr.bf16.mxu0 0
      %247 = vmatpush1.bf16.msra.mxu0 0
      %248 = vmatprep.subr.bf16.mxu0 0
      %249 = vmatpush1.bf16.msra.mxu0 0
      %250 = vmatprep.subr.bf16.mxu0 0
      %251 = vmatpush1.bf16.msra.mxu0 0
      %252 = vmatprep.mubr.bf16.mxu0 0
      %253 = vmatmul.mubr.bf16.gmra.mrb[0].mxu0 %v170
      %v254 = vpop.f32.mrb[0].mxu0
      %v255 = vadd.f32 0.0, %v254
      %v256 = vpop.f32.mrb[0].mxu0
      %v257 = vpop.f32.mrb[0].mxu0
      %v258 = vadd.f32 0.0, %v257
      %v259 = vpop.f32.mrb[0].mxu0
      %260 = vdwg.mxu0
      %v261 = vpack.c.bf16 %v258, %v255
      %v263 = vunpack.c.l.b16 %v261
      %v264 = vunpack.c.h.b16 %v261
      %v265 = vpack.c.b16 %v263, %v263
      %v266 = vpack.c.b16 %v264, %v264
      %269 = vst [vmem:[%s145] sm:$0xf] %v265
      %270 = vst [vmem:[%s145 + $0x4] sm:$0xf] %v266
      %s271 = smul.u32 2, %s13
      %p272 = scmp.lt.s32.totalorder %s271, 3
      %s273 = scalar_select %p272, %s271, 3
      %s274 = smul.addr %s273, 4
      %s275 = scalar_lea.vmem %s2, %s274
      // Predicated region
      $region29: #{_g1x1_fused.1} parent=27 // pred_check
        %p276 = pneg %p78
      $region30: #{_g1x1_fused.1} parent=27 // pred_check_branch
        %278 = sbr.rel (%p276) target = $region32
      $region31: #{_g1x1_fused.1} parent=27 // pred_region
        %s279 = smul.u32 2, %s13
      $region32: #{_g1x1_fused.1} parent=27 // pred_fallthru
        _
    $region28: #{_g1x1_fused.1} parent=5 // pred_fallthru
      _
    %p280 = scmp.le.s32.totalorder 2, %s8
    // Predicated region
    $region33: #{_g1x1_fused.1} parent=5 // pred_check
      %p281 = pneg %p280
    $region34: #{_g1x1_fused.1} parent=5 // pred_check_branch
      %283 = sbr.rel (%p281) target = $region36
    $region35: #{_g1x1_fused.1} parent=5 // pred_region
      %s284 = ssub.s32 %s8, 2
      // Predicated region
      $region37: #{_g1x1_fused.1} parent=35 // pred_check
        %p285 = pneg %p84
      $region38: #{_g1x1_fused.1} parent=35 // pred_check_branch
        %287 = sbr.rel (%p285) target = $region40
      $region39: #{_g1x1_fused.1} parent=35 // pred_region
        %s288 = smul.u32 2, %s14
        %p289 = scmp.lt.s32.totalorder %s288, 3
        %s290 = scalar_select %p289, %s288, 3
        %s291 = smul.addr %s290, 4
        %s292 = scalar_lea.vmem %s2, %s291
      $region40: #{_g1x1_fused.1} parent=35 // pred_fallthru
        _
    $region36: #{_g1x1_fused.1} parent=5 // pred_fallthru
      _
  $region6: #{_g1x1_fused.1} parent=0 // loop_footer
    %s12 = sadd.s32 1, %s8
  $region7: #{_g1x1_fused.1} parent=0 // loop_footer_branch
    %7 = sbr.rel target = $region3
  $region8: #{_g1x1_fused.1} parent=0 // loop_exit
    _

</llo_original>
